<compile_context>
chip_gen: v5e
topology: v5e:2x2
jax: 0.10.0
libtpu: 0.0.40
codegen_flags: <defaults>
</compile_context>

<pallas_src>
import jax
import jax.numpy as jnp
from jax.experimental import pallas as pl
from jax.experimental.pallas import tpu as pltpu


def _net_kernel(x_ref, w12_ref, b12_ref, w3_ref, b3_ref, o_ref):
    # x_ref:  (TB, L)    bf16
    # w12:    (L, HP)    bf16   fused Linear1+Linear2, hidden padded to 128
    # b12:    (1, HP)    f32    zero in padded hidden columns
    # w3:     (HP, CP)   bf16   BN-folded Linear3, classes padded to CP (lane-dense)
    # b3:     (1, CP)    f32    padded class columns hold -1e30 (masked from softmax)
    # o_ref:  (TB, C)    f32    only the real classes are written back
    h = jnp.dot(x_ref[...], w12_ref[...], preferred_element_type=jnp.float32)
    h = jnp.maximum(h + b12_ref[...], 0.0)          # bias + ReLU in f32

    logits = jnp.dot(h.astype(w3_ref.dtype), w3_ref[...],
                     preferred_element_type=jnp.float32) + b3_ref[...]

    # Log-softmax over the padded class axis.  Padded columns carry a -1e30
    # bias -> exp underflows to 0, so the normalizer only sees real classes.
    m = jnp.max(logits, axis=-1, keepdims=True)
    shifted = logits - m
    lse = jnp.log(jnp.sum(jnp.exp(shifted), axis=-1, keepdims=True))

    c = o_ref.shape[1]                               # static: real class count
    o_ref[...] = (shifted - lse)[:, :c]


@jax.jit
def net_forward(x, params):
    """x: (B, latent_input_size) float32. Returns log-probs (B, num_classes) f32."""
    w1, b1, w2, b2, bn_gamma, bn_beta, bn_mean, bn_var, w3, b3 = params
    eps = 1e-5

    # --- algebraic fusions (exact in eval mode, done once in f32) ---
    w12 = w1 @ w2                                   # (L, 100)
    b12 = b1 @ w2 + b2                              # (100,)
    bn_scale = bn_gamma / jnp.sqrt(bn_var + eps)
    bn_shift = bn_beta - bn_mean * bn_scale
    w3f = bn_scale[:, None] * w3                    # (100, C)
    b3f = bn_shift @ w3 + b3                        # (C,)

    B, L = x.shape
    H = w12.shape[1]
    C = w3.shape[1]

    # Pad hidden width to 128 lanes (zeros -> exact), classes to a 128 multiple.
    HP = ((H + 127) // 128) * 128
    CP = ((C + 127) // 128) * 128
    w12p = jnp.zeros((L, HP), jnp.float32).at[:, :H].set(w12)
    b12p = jnp.zeros((1, HP), jnp.float32).at[0, :H].set(b12)
    w3p = jnp.zeros((HP, CP), jnp.float32).at[:H, :C].set(w3f)
    b3p = jnp.full((1, CP), -1e30, jnp.float32).at[0, :C].set(b3f)

    # bf16 operands for the MXU (f32 accumulate inside the kernel).
    x_bf = x.astype(jnp.bfloat16)
    w12_bf = w12p.astype(jnp.bfloat16)
    w3_bf = w3p.astype(jnp.bfloat16)

    # Batch tiling: large tiles amortize per-step overhead; for B > 16 target
    # ~B/2 per tile so v7x's 2 TensorCores both get a grid step.
    if B <= 16:
        TB = max(8, ((B + 7) // 8) * 8)
    else:
        TB = min(2048, ((pl.cdiv(B, 2) + 15) // 16) * 16)
    n_tiles = pl.cdiv(B, TB)
    B_pad = n_tiles * TB
    if B_pad != B:                                   # only pad when necessary
        x_bf = jnp.pad(x_bf, ((0, B_pad - B), (0, 0)))

    out = pl.pallas_call(
        _net_kernel,
        out_shape=jax.ShapeDtypeStruct((B_pad, C), jnp.float32),
        grid=(n_tiles,),
        in_specs=[
            pl.BlockSpec((TB, L), lambda i: (i, 0)),      # x tile (pipelined)
            pl.BlockSpec((L, HP), lambda i: (0, 0)),      # fused W12 (resident)
            pl.BlockSpec((1, HP), lambda i: (0, 0)),      # b12
            pl.BlockSpec((HP, CP), lambda i: (0, 0)),     # BN-folded W3 (padded)
            pl.BlockSpec((1, CP), lambda i: (0, 0)),      # b3 (padded w/ -1e30)
        ],
        out_specs=pl.BlockSpec((TB, C), lambda i: (i, 0)),  # only real classes
        compiler_params=pltpu.CompilerParams(
            dimension_semantics=("parallel",)),
    )(x_bf, w12_bf, b12p, w3_bf, b3p)

    if B_pad != B:
        out = out[:B]                                # row trim only when padded
    return out


def init_params(key, latent_input_size, num_classes):
    """Deterministic synthetic parameter init (shapes match the PyTorch module)."""
    ks = jax.random.split(key, 6)

    def linear(kw, kb, fan_in, fan_out):
        bound = 1.0 / jnp.sqrt(fan_in)
        w = jax.random.uniform(kw, (fan_in, fan_out), jnp.float32, -bound, bound)
        b = jax.random.uniform(kb, (fan_out,), jnp.float32, -bound, bound)
        return w, b

    w1, b1 = linear(ks[0], ks[1], latent_input_size, 250)
    w2, b2 = linear(ks[2], ks[3], 250, 100)
    w3, b3 = linear(ks[4], ks[5], 100, num_classes)

    # BatchNorm1d(100) defaults: gamma=1, beta=0, running_mean=0, running_var=1
    bn_gamma = jnp.ones((100,), jnp.float32)
    bn_beta = jnp.zeros((100,), jnp.float32)
    bn_mean = jnp.zeros((100,), jnp.float32)
    bn_var = jnp.ones((100,), jnp.float32)

    return (w1, b1, w2, b2, bn_gamma, bn_beta, bn_mean, bn_var, w3, b3)


def _reference_forward(x, params):
    """Pure-JAX unfused f32 reference (eval mode)."""
    w1, b1, w2, b2, bn_gamma, bn_beta, bn_mean, bn_var, w3, b3 = params
    eps = 1e-5
    h1 = x @ w1 + b1
    h2 = jnp.maximum(h1 @ w2 + b2, 0.0)
    h2 = (h2 - bn_mean) / jnp.sqrt(bn_var + eps) * bn_gamma + bn_beta
    logits = h2 @ w3 + b3
    return jax.nn.log_softmax(logits, axis=-1)


if __name__ == "__main__":
    latent_input_size = 32
    num_classes = 10
    batch = 8

    key = jax.random.PRNGKey(0)
    k_x, k_p = jax.random.split(key)

    x = jax.random.normal(k_x, (batch, latent_input_size), jnp.float32)
    params = init_params(k_p, latent_input_size, num_classes)

    logp = net_forward(x, params)
    jax.block_until_ready(logp)

    assert logp.shape == (batch, num_classes)

    # log-softmax rows should sum to 1 in prob space (exact in-kernel f32 norm)
    row_sums = jnp.sum(jnp.exp(logp), axis=-1)
    assert bool(jnp.all(jnp.abs(row_sums - 1.0) < 1e-4))

    # match the unfused f32 reference (bf16 matmul operands -> loose tolerance)
    ref = _reference_forward(x, params)
    assert bool(jnp.all(jnp.abs(logp - ref) < 0.1))

    print("KERNEL_OK")
</pallas_src>

<mosaic_0001>
module attributes {stable_mosaic.version = 11 : i64} {
  func.func @_net_kernel(%arg0: i32, %arg1: memref<8x32xbf16, #tpu.memory_space<vmem>>, %arg2: memref<32x128xbf16, #tpu.memory_space<vmem>>, %arg3: memref<1x128xf32, #tpu.memory_space<vmem>>, %arg4: memref<128x128xbf16, #tpu.memory_space<vmem>>, %arg5: memref<1x128xf32, #tpu.memory_space<vmem>>, %arg6: memref<8x10xf32, #tpu.memory_space<vmem>>) attributes {dimension_semantics = [#tpu.dimension_semantics<parallel>], iteration_bounds = array<i64: 1>, scalar_prefetch = 0 : i64, scratch_operands = 0 : i64, tpu.core_type = #tpu.core_type<tc>, window_params = [{transform_indices = @transform_0, window_bounds = array<i64: 8, 32>}, {pipeline_mode = #tpu.pipeline_mode<synchronous>, transform_indices = @transform_1, window_bounds = array<i64: 32, 128>}, {pipeline_mode = #tpu.pipeline_mode<synchronous>, transform_indices = @transform_2, window_bounds = array<i64: 1, 128>}, {pipeline_mode = #tpu.pipeline_mode<synchronous>, transform_indices = @transform_3, window_bounds = array<i64: 128, 128>}, {pipeline_mode = #tpu.pipeline_mode<synchronous>, transform_indices = @transform_4, window_bounds = array<i64: 1, 128>}, {transform_indices = @transform_5, window_bounds = array<i64: 8, 10>}]} {
    %c0 = arith.constant 0 : index
    %c0_0 = arith.constant 0 : index
    %0 = vector.load %arg1[%c0, %c0_0] : memref<8x32xbf16, #tpu.memory_space<vmem>>, vector<8x32xbf16>
    %c0_1 = arith.constant 0 : index
    %c0_2 = arith.constant 0 : index
    %1 = vector.load %arg2[%c0_1, %c0_2] : memref<32x128xbf16, #tpu.memory_space<vmem>>, vector<32x128xbf16>
    %cst = arith.constant dense<0.000000e+00> : vector<8x128xf32>
    %2 = tpu.matmul %0, %1, %cst {dimension_numbers = #tpu.dot_dimension_numbers<[1], [0], [0], [1], [0, 0, 1, 1], [], []>} : vector<8x32xbf16>, vector<32x128xbf16>, vector<8x128xf32> -> vector<8x128xf32>
    %c0_3 = arith.constant 0 : index
    %c0_4 = arith.constant 0 : index
    %3 = vector.load %arg3[%c0_3, %c0_4] : memref<1x128xf32, #tpu.memory_space<vmem>>, vector<1x128xf32>
    %4 = vector.broadcast %3 : vector<1x128xf32> to vector<8x128xf32>
    %5 = arith.addf %2, %4 : vector<8x128xf32>
    %cst_5 = arith.constant 0.000000e+00 : f32
    %6 = vector.broadcast %cst_5 : f32 to vector<8x128xf32>
    %7 = arith.maximumf %5, %6 : vector<8x128xf32>
    %8 = arith.truncf %7 : vector<8x128xf32> to vector<8x128xbf16>
    %c0_6 = arith.constant 0 : index
    %c0_7 = arith.constant 0 : index
    %9 = vector.load %arg4[%c0_6, %c0_7] : memref<128x128xbf16, #tpu.memory_space<vmem>>, vector<128x128xbf16>
    %cst_8 = arith.constant dense<0.000000e+00> : vector<8x128xf32>
    %10 = tpu.matmul %8, %9, %cst_8 {dimension_numbers = #tpu.dot_dimension_numbers<[1], [0], [0], [1], [0, 0, 1, 1], [], []>} : vector<8x128xbf16>, vector<128x128xbf16>, vector<8x128xf32> -> vector<8x128xf32>
    %c0_9 = arith.constant 0 : index
    %c0_10 = arith.constant 0 : index
    %11 = vector.load %arg5[%c0_9, %c0_10] : memref<1x128xf32, #tpu.memory_space<vmem>>, vector<1x128xf32>
    %12 = vector.broadcast %11 : vector<1x128xf32> to vector<8x128xf32>
    %13 = arith.addf %10, %12 : vector<8x128xf32>
    %cst_11 = arith.constant dense<0xFF800000> : vector<8xf32>
    %14 = vector.multi_reduction <maximumf>, %13, %cst_11 [1] : vector<8x128xf32> to vector<8xf32>
    %15 = vector.shape_cast %14 : vector<8xf32> to vector<8x1xf32>
    %16 = vector.broadcast %15 : vector<8x1xf32> to vector<8x128xf32>
    %17 = arith.subf %13, %16 : vector<8x128xf32>
    %18 = math.exp %17 : vector<8x128xf32>
    %cst_12 = arith.constant dense<0.000000e+00> : vector<8xf32>
    %19 = vector.multi_reduction <add>, %18, %cst_12 [1] : vector<8x128xf32> to vector<8xf32>
    %20 = vector.shape_cast %19 : vector<8xf32> to vector<8x1xf32>
    %21 = math.log %20 : vector<8x1xf32>
    %22 = vector.broadcast %21 : vector<8x1xf32> to vector<8x128xf32>
    %23 = arith.subf %17, %22 : vector<8x128xf32>
    %24 = vector.extract_strided_slice %23 {offsets = [0, 0], sizes = [8, 10], strides = [1, 1]} : vector<8x128xf32> to vector<8x10xf32>
    %c0_13 = arith.constant 0 : index
    %c0_14 = arith.constant 0 : index
    %25 = vector.load %arg6[%c0_13, %c0_14] : memref<8x10xf32, #tpu.memory_space<vmem>>, vector<8x10xf32>
    tpu.vector_store %arg6[%c0_13, %c0_14], %24 {strides = array<i32>} : memref<8x10xf32, #tpu.memory_space<vmem>>, vector<8x10xf32>,
    return
  }
  func.func @transform_0(%arg0: i32) -> (i32, i32) {
    %c0_i32 = arith.constant 0 : i32
    %c0_i32_0 = arith.constant 0 : i32
    return %arg0, %c0_i32 : i32, i32
  }
  func.func @transform_1(%arg0: i32) -> (i32, i32) {
    %c0_i32 = arith.constant 0 : i32
    %c0_i32_0 = arith.constant 0 : i32
    %c0_i32_1 = arith.constant 0 : i32
    return %c0_i32, %c0_i32_0 : i32, i32
  }
  func.func @transform_2(%arg0: i32) -> (i32, i32) {
    %c0_i32 = arith.constant 0 : i32
    %c0_i32_0 = arith.constant 0 : i32
    %c0_i32_1 = arith.constant 0 : i32
    return %c0_i32, %c0_i32_0 : i32, i32
  }
  func.func @transform_3(%arg0: i32) -> (i32, i32) {
    %c0_i32 = arith.constant 0 : i32
    %c0_i32_0 = arith.constant 0 : i32
    %c0_i32_1 = arith.constant 0 : i32
    return %c0_i32, %c0_i32_0 : i32, i32
  }
  func.func @transform_4(%arg0: i32) -> (i32, i32) {
    %c0_i32 = arith.constant 0 : i32
    %c0_i32_0 = arith.constant 0 : i32
    %c0_i32_1 = arith.constant 0 : i32
    return %c0_i32, %c0_i32_0 : i32, i32
  }
  func.func @transform_5(%arg0: i32) -> (i32, i32) {
    %c0_i32 = arith.constant 0 : i32
    %c0_i32_0 = arith.constant 0 : i32
    return %arg0, %c0_i32 : i32, i32
  }
}

</mosaic_0001>

<llo_original>
// kernel: net_forward.1
$region0: #{net_forward.1}
  #allocation0 [shape = 'u32[]', space=smem, size = 0x4, offset = 0x4, fixed_abs, tag = 'smem constant byte address 0x4 - core index']
  #allocation1 [shape = 'u32[72,128]{1,0:T(1,128)}', space=vmem, size = 0x9000, scoped, tag = 'internal scratch']
  %s0 = inlined_call_operand.vmem [shape: bf16[8,32], index: 0, kind: input, shape index: {}]
  %s1 = inlined_call_operand.vmem [shape: bf16[32,128], index: 1, kind: input, shape index: {}]
  %s2 = inlined_call_operand.vmem [shape: f32[1,128], index: 2, kind: input, shape index: {}]
  %s3 = inlined_call_operand.vmem [shape: bf16[128,128], index: 3, kind: input, shape index: {}]
  %s4 = inlined_call_operand.vmem [shape: f32[1,128], index: 4, kind: input, shape index: {}]
  %s5 = inlined_call_operand.hbm [shape: f32[8,10], index: 5, kind: output, shape index: {}]
  %s6 = sld [smem:[#allocation0]]
  $region30: #{net_forward.1} parent=0
    _
  %s8 = ssub.s32 1, %s6
  %s9 = scalar_select 0, %s8, %s6
  $region1: #{net_forward.1} parent=0
    #allocation2 [shape = 'u8[4096]{0}', space=vmem, size = 0x1000, scoped, tag = 'output window, operand 0, single buffered']
    #allocation3 [shape = 's32[1]{0}', space=sflag, size = 0x4, scoped, tag = 'scoped memory for net_forward.1']
    %10 = vsyncpa [#allocation3], 0
    // Predicated region
    $region2: #{net_forward.1} parent=1 // pred_check
      _
    $region3: #{net_forward.1} parent=1 // pred_check_branch
      %12 = sbr.rel (0) target = $region5
    $region4: #{net_forward.1} parent=1 // pred_region
      _
    $region5: #{net_forward.1} parent=1 // pred_fallthru
      _
    // Predicated region
    $region6: #{net_forward.1} parent=1 // pred_check
      _
    $region7: #{net_forward.1} parent=1 // pred_check_branch
      %14 = sbr.rel (0) target = $region9
    $region8: #{net_forward.1} parent=1 // pred_region
      _
    $region9: #{net_forward.1} parent=1 // pred_fallthru
      _
    // Predicated region
    $region10: #{net_forward.1} parent=1 // pred_check
      _
    $region11: #{net_forward.1} parent=1 // pred_check_branch
      %16 = sbr.rel (0) target = $region13
    $region12: #{net_forward.1} parent=1 // pred_region
      _
    $region13: #{net_forward.1} parent=1 // pred_fallthru
      _
    // Predicated region
    $region14: #{net_forward.1} parent=1 // pred_check
      _
    $region15: #{net_forward.1} parent=1 // pred_check_branch
      %18 = sbr.rel (0) target = $region17
    $region16: #{net_forward.1} parent=1 // pred_region
      _
    $region17: #{net_forward.1} parent=1 // pred_fallthru
      _
    // Predicated region
    $region18: #{net_forward.1} parent=1 // pred_check
      _
    $region19: #{net_forward.1} parent=1 // pred_check_branch
      %20 = sbr.rel (0) target = $region21
    $region20: #{net_forward.1} parent=1 // pred_region
      _
    $region21: #{net_forward.1} parent=1 // pred_fallthru
      _
    %v22 = vld [vmem:[%s0] sm:$0xf]
    %v23 = vld [vmem:[%s1] sm:$0xf]
    %v24 = vld [vmem:[%s1 + $0x4] sm:$0xf]
    %v25 = vld [vmem:[%s1 + $0x8] sm:$0xf]
    %v26 = vld [vmem:[%s1 + $0xc] sm:$0xf]
    %v27 = vld [vmem:[%s2] sm:$0x1]
    %v29 = vperm.slane %v27, 0
    %v35 = vunpack.c.l.b16 %v23
    %v36 = vunpack.c.l.b16 %v24
    %v37 = vunpack.c.l.b16 %v25
    %v38 = vunpack.c.l.b16 %v26
    %v39 = vpack.c.b16 %v36, %v35
    %v40 = vpack.c.b16 %v38, %v37
    %vm43 = vcmask 261120
    %v45 = vsel %vm43, %v22, 0
    %47 = vmatpush.bf16.msra.mxu0 0
    %48 = vmatpush.bf16.msra.mxu0 0
    %49 = vmatpush.bf16.msra.mxu0 0
    %50 = vmatpush.bf16.msra.mxu0 0
    %51 = vmatpush.bf16.msra.mxu0 0
    %52 = vmatpush.bf16.msra.mxu0 0
    %53 = vmatpush.bf16.msra.mxu0 %v40
    %54 = vmatpush.bf16.msra.mxu0 %v39
    %55 = vmatmul.bf16.gmra.mxu0 %v45
    %v56 = vpop.f32.mrf.mxu0
    %v57 = vadd.f32 %v29, %v56
    %v58 = vpop.f32.mrf.mxu0
    %59 = vdwg.mxu0
    %v60 = vmax.f32 %v57, 0.0
    %v61 = vpack.c.bf16 %v60, %v60
    %v62 = vld [vmem:[%s3] sm:$0xf]
    %v63 = vld [vmem:[%s3 + $0x4] sm:$0xf]
    %v64 = vld [vmem:[%s3 + $0x8] sm:$0xf]
    %v65 = vld [vmem:[%s3 + $0xc] sm:$0xf]
    %v66 = vld [vmem:[%s3 + $0x10] sm:$0xf]
    %v67 = vld [vmem:[%s3 + $0x14] sm:$0xf]
    %v68 = vld [vmem:[%s3 + $0x18] sm:$0xf]
    %v69 = vld [vmem:[%s3 + $0x1c] sm:$0xf]
    %v70 = vld [vmem:[%s3 + $0x20] sm:$0xf]
    %v71 = vld [vmem:[%s3 + $0x24] sm:$0xf]
    %v72 = vld [vmem:[%s3 + $0x28] sm:$0xf]
    %v73 = vld [vmem:[%s3 + $0x2c] sm:$0xf]
    %v74 = vld [vmem:[%s3 + $0x30] sm:$0xf]
    %v75 = vld [vmem:[%s3 + $0x34] sm:$0xf]
    %v76 = vld [vmem:[%s3 + $0x38] sm:$0xf]
    %v77 = vld [vmem:[%s3 + $0x3c] sm:$0xf]
    %v78 = vld [vmem:[%s4] sm:$0x1]
    %v80 = vperm.slane %v78, 0
    %v98 = vunpack.c.l.b16 %v62
    %v99 = vunpack.c.l.b16 %v63
    %v100 = vunpack.c.l.b16 %v64
    %v101 = vunpack.c.l.b16 %v65
    %v102 = vunpack.c.l.b16 %v66
    %v103 = vunpack.c.l.b16 %v67
    %v104 = vunpack.c.l.b16 %v68
    %v105 = vunpack.c.l.b16 %v69
    %v106 = vunpack.c.l.b16 %v70
    %v107 = vunpack.c.l.b16 %v71
    %v108 = vunpack.c.l.b16 %v72
    %v109 = vunpack.c.l.b16 %v73
    %v110 = vunpack.c.l.b16 %v74
    %v111 = vunpack.c.l.b16 %v75
    %v112 = vunpack.c.l.b16 %v76
    %v113 = vunpack.c.l.b16 %v77
    %v114 = vpack.c.b16 %v99, %v98
    %v115 = vpack.c.b16 %v101, %v100
    %v116 = vpack.c.b16 %v103, %v102
    %v117 = vpack.c.b16 %v105, %v104
    %v118 = vpack.c.b16 %v107, %v106
    %v119 = vpack.c.b16 %v109, %v108
    %v120 = vpack.c.b16 %v111, %v110
    %v121 = vpack.c.b16 %v113, %v112
    %130 = vmatpush.bf16.msra.mxu0 %v121
    %131 = vmatpush.bf16.msra.mxu0 %v120
    %132 = vmatpush.bf16.msra.mxu0 %v119
    %133 = vmatpush.bf16.msra.mxu0 %v118
    %134 = vmatpush.bf16.msra.mxu0 %v117
    %135 = vmatpush.bf16.msra.mxu0 %v116
    %136 = vmatpush.bf16.msra.mxu0 %v115
    %137 = vmatpush.bf16.msra.mxu0 %v114
    %138 = vmatmul.bf16.gmra.mxu0 %v61
    %v139 = vpop.f32.mrf.mxu0
    %v140 = vadd.f32 %v80, %v139
    %v141 = vpop.f32.mrf.mxu0
    %142 = vdwg.mxu0
    %143 = vmax.xlane.f32.xlu0 %v140
    %v144 = vpop.xlane.xlu0 %143
    %v145 = vsub.f32 %v140, %v144
    %v146 = vmul.f32 %v145, 1.442695
    %v147 = vpow.pop %v146
    %148 = vadd.xlane.f32.xlu0 %v147
    %v149 = vpop.xlane.xlu0 %148
    %v150 = vlog2.pop %v149
    %v151 = vmul.f32 %v150, 0.6931472
    %v152 = vsub.f32 %v145, %v151
    %vm153 = vcmask 80896
    %154 = vst.msk [vmem:[#allocation2] sm:$0xff] %vm153, %v152
    // Predicated region
    $region22: #{net_forward.1} parent=1 // pred_check
      _
    $region23: #{net_forward.1} parent=1 // pred_check_branch
      %156 = sbr.rel (0) target = $region25
    $region24: #{net_forward.1} parent=1 // pred_region
      %158 = vsyncadd [#allocation3], 0
      %s160 = sshll.u32 [#allocation2], 4
      %s161 = int_to_ptr.vmem [resolvable:$true] %s160
      %s162 = sshll.u32 %s5, 4
      %s163 = int_to_ptr.hbm [resolvable:$true] %s162
      %165 = dma.vmem_to_hbm [thread:$0]  %s161, 128, %s163, [#allocation3]
    $region25: #{net_forward.1} parent=1 // pred_fallthru
      _
    // Predicated region
    $region26: #{net_forward.1} parent=1 // pred_check
      _
    $region27: #{net_forward.1} parent=1 // pred_check_branch
      %167 = sbr.rel (0) target = $region29
    $region28: #{net_forward.1} parent=1 // pred_region
      %169 = dma.done [#allocation3], 128
    $region29: #{net_forward.1} parent=1 // pred_fallthru
      _
    %170 = vsyncpa [#allocation3], 1

</llo_original>
